<compile_context>
chip_gen: v5e
topology: v5e:2x2
jax: 0.10.0
libtpu: 0.0.40
codegen_flags: <defaults>
</compile_context>

<pallas_src>
import jax
import jax.numpy as jnp
from jax import lax
from jax.experimental import pallas as pl
from jax.experimental.pallas import tpu as pltpu

# Full-precision f32 matmuls everywhere (wrapper fusion + reference) so the algebraic
# fusion (table @ w1)[id] == table[id] @ w1 holds to ~1e-6.
jax.config.update("jax_default_matmul_precision", "highest")


def _make_extractor_kernel(seq_len: int, batch_tile: int):
    def kernel(ids_ref, wf_ref, pooled_ref):
        # ids_ref:    (B_pad, S) int32 in SMEM (scalar prefetch; addressing data only)
        # wf_ref:     (V, H) f32 VMEM-resident fused table (constant block index)
        # pooled_ref: (batch_tile, H) f32 output block — sum over the sequence axis
        base = pl.program_id(0) * batch_tile

        def step(s, acc):
            # Gather the batch_tile rows for sequence position s:
            # relu(table[id] @ w1 + b1) == relu(w_fused[id]).
            rows = [
                wf_ref[pl.ds(ids_ref[base + i, s], 1), :]  # (1, H) dynamic row slice
                for i in range(batch_tile)
            ]
            tile = jnp.concatenate(rows, axis=0)           # (batch_tile, H)
            return acc + jnp.maximum(tile, 0.0)            # ReLU + running sum (VPU)

        pooled_ref[...] = lax.fori_loop(
            0,
            seq_len,
            step,
            jnp.zeros(pooled_ref.shape, jnp.float32),
            unroll=True,
        )

    return kernel


def prepare_detector_params(params):
    """Hoisted out of the per-call forward (review item): token-independent fusion."""
    table, w1, b1, w2, b2 = params
    # Fuse embedding + fc1:  relu(table[id] @ w1 + b1) == relu(w_fused[id]).
    # (On v6e/v7x, cast to bf16 here if numerics allow — halves gather bytes.)
    w_fused = (jnp.dot(table, w1, preferred_element_type=jnp.float32) + b1).astype(
        jnp.float32
    )
    return w_fused, w2, b2


def transformer_wm_detector_forward(
    tokens, lengths, src_key_padding_mask, prepared_params, batch_tile=8
):
    # TODO(synk): lengths / src_key_padding_mask would drive masked attention / masked
    # pooling in the real encoder; the approximated forward pools over all positions,
    # so they are accepted but unused (matches the previously reviewed reference).
    del lengths, src_key_padding_mask
    w_fused, w2, b2 = prepared_params
    B, S = tokens.shape
    V, H = w_fused.shape

    bt = batch_tile
    b_pad = -(-B // bt) * bt
    tokens_p = tokens.astype(jnp.int32)
    if b_pad != B:
        tokens_p = jnp.pad(tokens_p, ((0, b_pad - B), (0, 0)))

    # VMEM budget from the actual table size (+ double-buffer slack + output blocks).
    table_bytes = V * H * w_fused.dtype.itemsize
    vmem_limit = 2 * table_bytes + 4 * (bt * H * 4) + (2 << 20)
    vmem_limit = int(min(max(vmem_limit, 4 << 20), 100 << 20))

    grid_spec = pltpu.PrefetchScalarGridSpec(
        num_scalar_prefetch=1,            # token ids -> SMEM, visible in the kernel
        grid=(b_pad // bt,),              # one step per batch tile
        in_specs=[
            # Full fused table, resident in VMEM (constant block index -> single DMA).
            pl.BlockSpec((V, H), lambda g, ids: (0, 0)),
        ],
        # Lane+sublane dense (8, H) output block per batch tile -> unmasked stores.
        out_specs=pl.BlockSpec((bt, H), lambda g, ids: (g, 0)),
    )

    pooled_sum = pl.pallas_call(
        _make_extractor_kernel(S, bt),
        out_shape=jax.ShapeDtypeStruct((b_pad, H), jnp.float32),
        grid_spec=grid_spec,
        compiler_params=pltpu.CompilerParams(
            # batch-tile axis shards across v7x's 2 TensorCores (no-op on v5e/v6e).
            dimension_semantics=("parallel",),
            vmem_limit_bytes=vmem_limit,
        ),
    )(tokens_p, w_fused)

    pooled_sum = pooled_sum[:B]

    # Output head (H -> 1) kept in XLA; the 1/S mean is folded into the head weights
    # (kernel only sums — no in-kernel finalize pass).
    inv_s = jnp.float32(1.0 / S)
    return jnp.dot(pooled_sum, w2 * inv_s) + b2[0]


def init_params(key, vocab_size, embedding_size, hidden_size, num_layers=2, n_heads=4):
    # TODO(synk): num_layers / n_heads parameterize the transformer encoder stack,
    # which is not reproduced in this approximation (see module-level comment).
    del num_layers, n_heads
    k1, k2, k3, k4, k5 = jax.random.split(key, 5)
    table = jax.random.normal(k1, (vocab_size, embedding_size), jnp.float32)
    w1 = jax.random.normal(k2, (embedding_size, hidden_size), jnp.float32) / jnp.sqrt(
        embedding_size
    )
    b1 = jax.random.normal(k3, (1, hidden_size), jnp.float32) * 0.01
    w2 = jax.random.normal(k4, (hidden_size, 1), jnp.float32) / jnp.sqrt(hidden_size)
    b2 = jax.random.normal(k5, (1, 1), jnp.float32) * 0.01
    return table, w1, b1, w2, b2


def reference_forward(tokens, params):
    table, w1, b1, w2, b2 = params
    x = table[tokens]                                # (B, S, E)
    h = jnp.maximum(x @ w1 + b1[0], 0.0)             # (B, S, H)
    pooled = jnp.mean(h, axis=1)                     # (B, H)
    return pooled @ w2 + b2[0]                       # (B, 1)


if __name__ == "__main__":
    VOCAB, EMB, HID = 256, 64, 128   # H lane-aligned to 128
    NUM_LAYERS, N_HEADS = 2, 4       # accepted for module-signature parity; unused
    B, S = 2, 8

    key = jax.random.PRNGKey(0)
    k_params, k_tok = jax.random.split(key, 2)

    params = init_params(k_params, VOCAB, EMB, HID, NUM_LAYERS, N_HEADS)
    prepared = prepare_detector_params(params)   # fused once, outside the hot path

    tokens = jax.random.randint(k_tok, (B, S), 0, VOCAB, dtype=jnp.int32)
    lengths = jnp.full((B,), S, dtype=jnp.int32)
    src_key_padding_mask = jnp.zeros((B, S), dtype=jnp.bool_)

    out = transformer_wm_detector_forward(tokens, lengths, src_key_padding_mask, prepared)
    out = jax.block_until_ready(out)

    ref = reference_forward(tokens, params)
    assert out.shape == (B, 1), out.shape
    assert jnp.allclose(out, ref, atol=1e-4, rtol=1e-4), (out, ref)

    print("KERNEL_OK")
</pallas_src>

<mosaic_0001>
module attributes {stable_mosaic.version = 11 : i64} {
  func.func @kernel(%arg0: i32, %arg1: memref<8x8xi32, #tpu.memory_space<smem>>, %arg2: memref<256x128xf32, #tpu.memory_space<vmem>>, %arg3: memref<8x128xf32, #tpu.memory_space<vmem>>) attributes {dimension_semantics = [#tpu.dimension_semantics<parallel>], iteration_bounds = array<i64: 1>, scalar_prefetch = 1 : i64, scratch_operands = 0 : i64, tpu.core_type = #tpu.core_type<tc>, window_params = [{pipeline_mode = #tpu.pipeline_mode<synchronous>, transform_indices = @transform_0, window_bounds = array<i64: 256, 128>}, {transform_indices = @transform_1, window_bounds = array<i64: 8, 128>}]} {
    %c8_i32 = arith.constant 8 : i32
    %0 = arith.muli %arg0, %c8_i32 : i32
    %cst = arith.constant 0.000000e+00 : f32
    %1 = vector.broadcast %cst : f32 to vector<8x128xf32>
    %c0_i32 = arith.constant 0 : i32
    %c0_i32_0 = arith.constant 0 : i32
    %2 = arith.addi %0, %c0_i32_0 : i32
    %3 = arith.index_cast %2 : i32 to index
    %4 = arith.index_cast %c0_i32 : i32 to index
    %5 = memref.load %arg1[%3, %4] : memref<8x8xi32, #tpu.memory_space<smem>>
    %6 = arith.index_cast %5 : i32 to index
    %c0 = arith.constant 0 : index
    %7 = vector.load %arg2[%6, %c0] : memref<256x128xf32, #tpu.memory_space<vmem>>, vector<1x128xf32>
    %c1_i32 = arith.constant 1 : i32
    %8 = arith.addi %0, %c1_i32 : i32
    %9 = arith.index_cast %8 : i32 to index
    %10 = arith.index_cast %c0_i32 : i32 to index
    %11 = memref.load %arg1[%9, %10] : memref<8x8xi32, #tpu.memory_space<smem>>
    %12 = arith.index_cast %11 : i32 to index
    %c0_1 = arith.constant 0 : index
    %13 = vector.load %arg2[%12, %c0_1] : memref<256x128xf32, #tpu.memory_space<vmem>>, vector<1x128xf32>
    %c2_i32 = arith.constant 2 : i32
    %14 = arith.addi %0, %c2_i32 : i32
    %15 = arith.index_cast %14 : i32 to index
    %16 = arith.index_cast %c0_i32 : i32 to index
    %17 = memref.load %arg1[%15, %16] : memref<8x8xi32, #tpu.memory_space<smem>>
    %18 = arith.index_cast %17 : i32 to index
    %c0_2 = arith.constant 0 : index
    %19 = vector.load %arg2[%18, %c0_2] : memref<256x128xf32, #tpu.memory_space<vmem>>, vector<1x128xf32>
    %c3_i32 = arith.constant 3 : i32
    %20 = arith.addi %0, %c3_i32 : i32
    %21 = arith.index_cast %20 : i32 to index
    %22 = arith.index_cast %c0_i32 : i32 to index
    %23 = memref.load %arg1[%21, %22] : memref<8x8xi32, #tpu.memory_space<smem>>
    %24 = arith.index_cast %23 : i32 to index
    %c0_3 = arith.constant 0 : index
    %25 = vector.load %arg2[%24, %c0_3] : memref<256x128xf32, #tpu.memory_space<vmem>>, vector<1x128xf32>
    %c4_i32 = arith.constant 4 : i32
    %26 = arith.addi %0, %c4_i32 : i32
    %27 = arith.index_cast %26 : i32 to index
    %28 = arith.index_cast %c0_i32 : i32 to index
    %29 = memref.load %arg1[%27, %28] : memref<8x8xi32, #tpu.memory_space<smem>>
    %30 = arith.index_cast %29 : i32 to index
    %c0_4 = arith.constant 0 : index
    %31 = vector.load %arg2[%30, %c0_4] : memref<256x128xf32, #tpu.memory_space<vmem>>, vector<1x128xf32>
    %c5_i32 = arith.constant 5 : i32
    %32 = arith.addi %0, %c5_i32 : i32
    %33 = arith.index_cast %32 : i32 to index
    %34 = arith.index_cast %c0_i32 : i32 to index
    %35 = memref.load %arg1[%33, %34] : memref<8x8xi32, #tpu.memory_space<smem>>
    %36 = arith.index_cast %35 : i32 to index
    %c0_5 = arith.constant 0 : index
    %37 = vector.load %arg2[%36, %c0_5] : memref<256x128xf32, #tpu.memory_space<vmem>>, vector<1x128xf32>
    %c6_i32 = arith.constant 6 : i32
    %38 = arith.addi %0, %c6_i32 : i32
    %39 = arith.index_cast %38 : i32 to index
    %40 = arith.index_cast %c0_i32 : i32 to index
    %41 = memref.load %arg1[%39, %40] : memref<8x8xi32, #tpu.memory_space<smem>>
    %42 = arith.index_cast %41 : i32 to index
    %c0_6 = arith.constant 0 : index
    %43 = vector.load %arg2[%42, %c0_6] : memref<256x128xf32, #tpu.memory_space<vmem>>, vector<1x128xf32>
    %c7_i32 = arith.constant 7 : i32
    %44 = arith.addi %0, %c7_i32 : i32
    %45 = arith.index_cast %44 : i32 to index
    %46 = arith.index_cast %c0_i32 : i32 to index
    %47 = memref.load %arg1[%45, %46] : memref<8x8xi32, #tpu.memory_space<smem>>
    %48 = arith.index_cast %47 : i32 to index
    %c0_7 = arith.constant 0 : index
    %49 = vector.load %arg2[%48, %c0_7] : memref<256x128xf32, #tpu.memory_space<vmem>>, vector<1x128xf32>
    %50 = tpu.concatenate %7, %13, %19, %25, %31, %37, %43, %49 in 0 : vector<1x128xf32>, vector<1x128xf32>, vector<1x128xf32>, vector<1x128xf32>, vector<1x128xf32>, vector<1x128xf32>, vector<1x128xf32>, vector<1x128xf32> -> vector<8x128xf32>
    %cst_8 = arith.constant 0.000000e+00 : f32
    %51 = vector.broadcast %cst_8 : f32 to vector<8x128xf32>
    %52 = arith.maximumf %50, %51 : vector<8x128xf32>
    %53 = arith.addf %1, %52 : vector<8x128xf32>
    %c1_i32_9 = arith.constant 1 : i32
    %c0_i32_10 = arith.constant 0 : i32
    %54 = arith.addi %0, %c0_i32_10 : i32
    %55 = arith.index_cast %54 : i32 to index
    %56 = arith.index_cast %c1_i32_9 : i32 to index
    %57 = memref.load %arg1[%55, %56] : memref<8x8xi32, #tpu.memory_space<smem>>
    %58 = arith.index_cast %57 : i32 to index
    %c0_11 = arith.constant 0 : index
    %59 = vector.load %arg2[%58, %c0_11] : memref<256x128xf32, #tpu.memory_space<vmem>>, vector<1x128xf32>
    %c1_i32_12 = arith.constant 1 : i32
    %60 = arith.addi %0, %c1_i32_12 : i32
    %61 = arith.index_cast %60 : i32 to index
    %62 = arith.index_cast %c1_i32_9 : i32 to index
    %63 = memref.load %arg1[%61, %62] : memref<8x8xi32, #tpu.memory_space<smem>>
    %64 = arith.index_cast %63 : i32 to index
    %c0_13 = arith.constant 0 : index
    %65 = vector.load %arg2[%64, %c0_13] : memref<256x128xf32, #tpu.memory_space<vmem>>, vector<1x128xf32>
    %c2_i32_14 = arith.constant 2 : i32
    %66 = arith.addi %0, %c2_i32_14 : i32
    %67 = arith.index_cast %66 : i32 to index
    %68 = arith.index_cast %c1_i32_9 : i32 to index
    %69 = memref.load %arg1[%67, %68] : memref<8x8xi32, #tpu.memory_space<smem>>
    %70 = arith.index_cast %69 : i32 to index
    %c0_15 = arith.constant 0 : index
    %71 = vector.load %arg2[%70, %c0_15] : memref<256x128xf32, #tpu.memory_space<vmem>>, vector<1x128xf32>
    %c3_i32_16 = arith.constant 3 : i32
    %72 = arith.addi %0, %c3_i32_16 : i32
    %73 = arith.index_cast %72 : i32 to index
    %74 = arith.index_cast %c1_i32_9 : i32 to index
    %75 = memref.load %arg1[%73, %74] : memref<8x8xi32, #tpu.memory_space<smem>>
    %76 = arith.index_cast %75 : i32 to index
    %c0_17 = arith.constant 0 : index
    %77 = vector.load %arg2[%76, %c0_17] : memref<256x128xf32, #tpu.memory_space<vmem>>, vector<1x128xf32>
    %c4_i32_18 = arith.constant 4 : i32
    %78 = arith.addi %0, %c4_i32_18 : i32
    %79 = arith.index_cast %78 : i32 to index
    %80 = arith.index_cast %c1_i32_9 : i32 to index
    %81 = memref.load %arg1[%79, %80] : memref<8x8xi32, #tpu.memory_space<smem>>
    %82 = arith.index_cast %81 : i32 to index
    %c0_19 = arith.constant 0 : index
    %83 = vector.load %arg2[%82, %c0_19] : memref<256x128xf32, #tpu.memory_space<vmem>>, vector<1x128xf32>
    %c5_i32_20 = arith.constant 5 : i32
    %84 = arith.addi %0, %c5_i32_20 : i32
    %85 = arith.index_cast %84 : i32 to index
    %86 = arith.index_cast %c1_i32_9 : i32 to index
    %87 = memref.load %arg1[%85, %86] : memref<8x8xi32, #tpu.memory_space<smem>>
    %88 = arith.index_cast %87 : i32 to index
    %c0_21 = arith.constant 0 : index
    %89 = vector.load %arg2[%88, %c0_21] : memref<256x128xf32, #tpu.memory_space<vmem>>, vector<1x128xf32>
    %c6_i32_22 = arith.constant 6 : i32
    %90 = arith.addi %0, %c6_i32_22 : i32
    %91 = arith.index_cast %90 : i32 to index
    %92 = arith.index_cast %c1_i32_9 : i32 to index
    %93 = memref.load %arg1[%91, %92] : memref<8x8xi32, #tpu.memory_space<smem>>
    %94 = arith.index_cast %93 : i32 to index
    %c0_23 = arith.constant 0 : index
    %95 = vector.load %arg2[%94, %c0_23] : memref<256x128xf32, #tpu.memory_space<vmem>>, vector<1x128xf32>
    %c7_i32_24 = arith.constant 7 : i32
    %96 = arith.addi %0, %c7_i32_24 : i32
    %97 = arith.index_cast %96 : i32 to index
    %98 = arith.index_cast %c1_i32_9 : i32 to index
    %99 = memref.load %arg1[%97, %98] : memref<8x8xi32, #tpu.memory_space<smem>>
    %100 = arith.index_cast %99 : i32 to index
    %c0_25 = arith.constant 0 : index
    %101 = vector.load %arg2[%100, %c0_25] : memref<256x128xf32, #tpu.memory_space<vmem>>, vector<1x128xf32>
    %102 = tpu.concatenate %59, %65, %71, %77, %83, %89, %95, %101 in 0 : vector<1x128xf32>, vector<1x128xf32>, vector<1x128xf32>, vector<1x128xf32>, vector<1x128xf32>, vector<1x128xf32>, vector<1x128xf32>, vector<1x128xf32> -> vector<8x128xf32>
    %cst_26 = arith.constant 0.000000e+00 : f32
    %103 = vector.broadcast %cst_26 : f32 to vector<8x128xf32>
    %104 = arith.maximumf %102, %103 : vector<8x128xf32>
    %105 = arith.addf %53, %104 : vector<8x128xf32>
    %c2_i32_27 = arith.constant 2 : i32
    %c0_i32_28 = arith.constant 0 : i32
    %106 = arith.addi %0, %c0_i32_28 : i32
    %107 = arith.index_cast %106 : i32 to index
    %108 = arith.index_cast %c2_i32_27 : i32 to index
    %109 = memref.load %arg1[%107, %108] : memref<8x8xi32, #tpu.memory_space<smem>>
    %110 = arith.index_cast %109 : i32 to index
    %c0_29 = arith.constant 0 : index
    %111 = vector.load %arg2[%110, %c0_29] : memref<256x128xf32, #tpu.memory_space<vmem>>, vector<1x128xf32>
    %c1_i32_30 = arith.constant 1 : i32
    %112 = arith.addi %0, %c1_i32_30 : i32
    %113 = arith.index_cast %112 : i32 to index
    %114 = arith.index_cast %c2_i32_27 : i32 to index
    %115 = memref.load %arg1[%113, %114] : memref<8x8xi32, #tpu.memory_space<smem>>
    %116 = arith.index_cast %115 : i32 to index
    %c0_31 = arith.constant 0 : index
    %117 = vector.load %arg2[%116, %c0_31] : memref<256x128xf32, #tpu.memory_space<vmem>>, vector<1x128xf32>
    %c2_i32_32 = arith.constant 2 : i32
    %118 = arith.addi %0, %c2_i32_32 : i32
    %119 = arith.index_cast %118 : i32 to index
    %120 = arith.index_cast %c2_i32_27 : i32 to index
    %121 = memref.load %arg1[%119, %120] : memref<8x8xi32, #tpu.memory_space<smem>>
    %122 = arith.index_cast %121 : i32 to index
    %c0_33 = arith.constant 0 : index
    %123 = vector.load %arg2[%122, %c0_33] : memref<256x128xf32, #tpu.memory_space<vmem>>, vector<1x128xf32>
    %c3_i32_34 = arith.constant 3 : i32
    %124 = arith.addi %0, %c3_i32_34 : i32
    %125 = arith.index_cast %124 : i32 to index
    %126 = arith.index_cast %c2_i32_27 : i32 to index
    %127 = memref.load %arg1[%125, %126] : memref<8x8xi32, #tpu.memory_space<smem>>
    %128 = arith.index_cast %127 : i32 to index
    %c0_35 = arith.constant 0 : index
    %129 = vector.load %arg2[%128, %c0_35] : memref<256x128xf32, #tpu.memory_space<vmem>>, vector<1x128xf32>
    %c4_i32_36 = arith.constant 4 : i32
    %130 = arith.addi %0, %c4_i32_36 : i32
    %131 = arith.index_cast %130 : i32 to index
    %132 = arith.index_cast %c2_i32_27 : i32 to index
    %133 = memref.load %arg1[%131, %132] : memref<8x8xi32, #tpu.memory_space<smem>>
    %134 = arith.index_cast %133 : i32 to index
    %c0_37 = arith.constant 0 : index
    %135 = vector.load %arg2[%134, %c0_37] : memref<256x128xf32, #tpu.memory_space<vmem>>, vector<1x128xf32>
    %c5_i32_38 = arith.constant 5 : i32
    %136 = arith.addi %0, %c5_i32_38 : i32
    %137 = arith.index_cast %136 : i32 to index
    %138 = arith.index_cast %c2_i32_27 : i32 to index
    %139 = memref.load %arg1[%137, %138] : memref<8x8xi32, #tpu.memory_space<smem>>
    %140 = arith.index_cast %139 : i32 to index
    %c0_39 = arith.constant 0 : index
    %141 = vector.load %arg2[%140, %c0_39] : memref<256x128xf32, #tpu.memory_space<vmem>>, vector<1x128xf32>
    %c6_i32_40 = arith.constant 6 : i32
    %142 = arith.addi %0, %c6_i32_40 : i32
    %143 = arith.index_cast %142 : i32 to index
    %144 = arith.index_cast %c2_i32_27 : i32 to index
    %145 = memref.load %arg1[%143, %144] : memref<8x8xi32, #tpu.memory_space<smem>>
    %146 = arith.index_cast %145 : i32 to index
    %c0_41 = arith.constant 0 : index
    %147 = vector.load %arg2[%146, %c0_41] : memref<256x128xf32, #tpu.memory_space<vmem>>, vector<1x128xf32>
    %c7_i32_42 = arith.constant 7 : i32
    %148 = arith.addi %0, %c7_i32_42 : i32
    %149 = arith.index_cast %148 : i32 to index
    %150 = arith.index_cast %c2_i32_27 : i32 to index
    %151 = memref.load %arg1[%149, %150] : memref<8x8xi32, #tpu.memory_space<smem>>
    %152 = arith.index_cast %151 : i32 to index
    %c0_43 = arith.constant 0 : index
    %153 = vector.load %arg2[%152, %c0_43] : memref<256x128xf32, #tpu.memory_space<vmem>>, vector<1x128xf32>
    %154 = tpu.concatenate %111, %117, %123, %129, %135, %141, %147, %153 in 0 : vector<1x128xf32>, vector<1x128xf32>, vector<1x128xf32>, vector<1x128xf32>, vector<1x128xf32>, vector<1x128xf32>, vector<1x128xf32>, vector<1x128xf32> -> vector<8x128xf32>
    %cst_44 = arith.constant 0.000000e+00 : f32
    %155 = vector.broadcast %cst_44 : f32 to vector<8x128xf32>
    %156 = arith.maximumf %154, %155 : vector<8x128xf32>
    %157 = arith.addf %105, %156 : vector<8x128xf32>
    %c3_i32_45 = arith.constant 3 : i32
    %c0_i32_46 = arith.constant 0 : i32
    %158 = arith.addi %0, %c0_i32_46 : i32
    %159 = arith.index_cast %158 : i32 to index
    %160 = arith.index_cast %c3_i32_45 : i32 to index
    %161 = memref.load %arg1[%159, %160] : memref<8x8xi32, #tpu.memory_space<smem>>
    %162 = arith.index_cast %161 : i32 to index
    %c0_47 = arith.constant 0 : index
    %163 = vector.load %arg2[%162, %c0_47] : memref<256x128xf32, #tpu.memory_space<vmem>>, vector<1x128xf32>
    %c1_i32_48 = arith.constant 1 : i32
    %164 = arith.addi %0, %c1_i32_48 : i32
    %165 = arith.index_cast %164 : i32 to index
    %166 = arith.index_cast %c3_i32_45 : i32 to index
    %167 = memref.load %arg1[%165, %166] : memref<8x8xi32, #tpu.memory_space<smem>>
    %168 = arith.index_cast %167 : i32 to index
    %c0_49 = arith.constant 0 : index
    %169 = vector.load %arg2[%168, %c0_49] : memref<256x128xf32, #tpu.memory_space<vmem>>, vector<1x128xf32>
    %c2_i32_50 = arith.constant 2 : i32
    %170 = arith.addi %0, %c2_i32_50 : i32
    %171 = arith.index_cast %170 : i32 to index
    %172 = arith.index_cast %c3_i32_45 : i32 to index
    %173 = memref.load %arg1[%171, %172] : memref<8x8xi32, #tpu.memory_space<smem>>
    %174 = arith.index_cast %173 : i32 to index
    %c0_51 = arith.constant 0 : index
    %175 = vector.load %arg2[%174, %c0_51] : memref<256x128xf32, #tpu.memory_space<vmem>>, vector<1x128xf32>
    %c3_i32_52 = arith.constant 3 : i32
    %176 = arith.addi %0, %c3_i32_52 : i32
    %177 = arith.index_cast %176 : i32 to index
    %178 = arith.index_cast %c3_i32_45 : i32 to index
    %179 = memref.load %arg1[%177, %178] : memref<8x8xi32, #tpu.memory_space<smem>>
    %180 = arith.index_cast %179 : i32 to index
    %c0_53 = arith.constant 0 : index
    %181 = vector.load %arg2[%180, %c0_53] : memref<256x128xf32, #tpu.memory_space<vmem>>, vector<1x128xf32>
    %c4_i32_54 = arith.constant 4 : i32
    %182 = arith.addi %0, %c4_i32_54 : i32
    %183 = arith.index_cast %182 : i32 to index
    %184 = arith.index_cast %c3_i32_45 : i32 to index
    %185 = memref.load %arg1[%183, %184] : memref<8x8xi32, #tpu.memory_space<smem>>
    %186 = arith.index_cast %185 : i32 to index
    %c0_55 = arith.constant 0 : index
    %187 = vector.load %arg2[%186, %c0_55] : memref<256x128xf32, #tpu.memory_space<vmem>>, vector<1x128xf32>
    %c5_i32_56 = arith.constant 5 : i32
    %188 = arith.addi %0, %c5_i32_56 : i32
    %189 = arith.index_cast %188 : i32 to index
    %190 = arith.index_cast %c3_i32_45 : i32 to index
    %191 = memref.load %arg1[%189, %190] : memref<8x8xi32, #tpu.memory_space<smem>>
    %192 = arith.index_cast %191 : i32 to index
    %c0_57 = arith.constant 0 : index
    %193 = vector.load %arg2[%192, %c0_57] : memref<256x128xf32, #tpu.memory_space<vmem>>, vector<1x128xf32>
    %c6_i32_58 = arith.constant 6 : i32
    %194 = arith.addi %0, %c6_i32_58 : i32
    %195 = arith.index_cast %194 : i32 to index
    %196 = arith.index_cast %c3_i32_45 : i32 to index
    %197 = memref.load %arg1[%195, %196] : memref<8x8xi32, #tpu.memory_space<smem>>
    %198 = arith.index_cast %197 : i32 to index
    %c0_59 = arith.constant 0 : index
    %199 = vector.load %arg2[%198, %c0_59] : memref<256x128xf32, #tpu.memory_space<vmem>>, vector<1x128xf32>
    %c7_i32_60 = arith.constant 7 : i32
    %200 = arith.addi %0, %c7_i32_60 : i32
    %201 = arith.index_cast %200 : i32 to index
    %202 = arith.index_cast %c3_i32_45 : i32 to index
    %203 = memref.load %arg1[%201, %202] : memref<8x8xi32, #tpu.memory_space<smem>>
    %204 = arith.index_cast %203 : i32 to index
    %c0_61 = arith.constant 0 : index
    %205 = vector.load %arg2[%204, %c0_61] : memref<256x128xf32, #tpu.memory_space<vmem>>, vector<1x128xf32>
    %206 = tpu.concatenate %163, %169, %175, %181, %187, %193, %199, %205 in 0 : vector<1x128xf32>, vector<1x128xf32>, vector<1x128xf32>, vector<1x128xf32>, vector<1x128xf32>, vector<1x128xf32>, vector<1x128xf32>, vector<1x128xf32> -> vector<8x128xf32>
    %cst_62 = arith.constant 0.000000e+00 : f32
    %207 = vector.broadcast %cst_62 : f32 to vector<8x128xf32>
    %208 = arith.maximumf %206, %207 : vector<8x128xf32>
    %209 = arith.addf %157, %208 : vector<8x128xf32>
    %c4_i32_63 = arith.constant 4 : i32
    %c0_i32_64 = arith.constant 0 : i32
    %210 = arith.addi %0, %c0_i32_64 : i32
    %211 = arith.index_cast %210 : i32 to index
    %212 = arith.index_cast %c4_i32_63 : i32 to index
    %213 = memref.load %arg1[%211, %212] : memref<8x8xi32, #tpu.memory_space<smem>>
    %214 = arith.index_cast %213 : i32 to index
    %c0_65 = arith.constant 0 : index
    %215 = vector.load %arg2[%214, %c0_65] : memref<256x128xf32, #tpu.memory_space<vmem>>, vector<1x128xf32>
    %c1_i32_66 = arith.constant 1 : i32
    %216 = arith.addi %0, %c1_i32_66 : i32
    %217 = arith.index_cast %216 : i32 to index
    %218 = arith.index_cast %c4_i32_63 : i32 to index
    %219 = memref.load %arg1[%217, %218] : memref<8x8xi32, #tpu.memory_space<smem>>
    %220 = arith.index_cast %219 : i32 to index
    %c0_67 = arith.constant 0 : index
    %221 = vector.load %arg2[%220, %c0_67] : memref<256x128xf32, #tpu.memory_space<vmem>>, vector<1x128xf32>
    %c2_i32_68 = arith.constant 2 : i32
    %222 = arith.addi %0, %c2_i32_68 : i32
    %223 = arith.index_cast %222 : i32 to index
    %224 = arith.index_cast %c4_i32_63 : i32 to index
    %225 = memref.load %arg1[%223, %224] : memref<8x8xi32, #tpu.memory_space<smem>>
    %226 = arith.index_cast %225 : i32 to index
    %c0_69 = arith.constant 0 : index
    %227 = vector.load %arg2[%226, %c0_69] : memref<256x128xf32, #tpu.memory_space<vmem>>, vector<1x128xf32>
    %c3_i32_70 = arith.constant 3 : i32
    %228 = arith.addi %0, %c3_i32_70 : i32
    %229 = arith.index_cast %228 : i32 to index
    %230 = arith.index_cast %c4_i32_63 : i32 to index
    %231 = memref.load %arg1[%229, %230] : memref<8x8xi32, #tpu.memory_space<smem>>
    %232 = arith.index_cast %231 : i32 to index
    %c0_71 = arith.constant 0 : index
    %233 = vector.load %arg2[%232, %c0_71] : memref<256x128xf32, #tpu.memory_space<vmem>>, vector<1x128xf32>
    %c4_i32_72 = arith.constant 4 : i32
    %234 = arith.addi %0, %c4_i32_72 : i32
    %235 = arith.index_cast %234 : i32 to index
    %236 = arith.index_cast %c4_i32_63 : i32 to index
    %237 = memref.load %arg1[%235, %236] : memref<8x8xi32, #tpu.memory_space<smem>>
    %238 = arith.index_cast %237 : i32 to index
    %c0_73 = arith.constant 0 : index
    %239 = vector.load %arg2[%238, %c0_73] : memref<256x128xf32, #tpu.memory_space<vmem>>, vector<1x128xf32>
    %c5_i32_74 = arith.constant 5 : i32
    %240 = arith.addi %0, %c5_i32_74 : i32
    %241 = arith.index_cast %240 : i32 to index
    %242 = arith.index_cast %c4_i32_63 : i32 to index
    %243 = memref.load %arg1[%241, %242] : memref<8x8xi32, #tpu.memory_space<smem>>
    %244 = arith.index_cast %243 : i32 to index
    %c0_75 = arith.constant 0 : index
    %245 = vector.load %arg2[%244, %c0_75] : memref<256x128xf32, #tpu.memory_space<vmem>>, vector<1x128xf32>
    %c6_i32_76 = arith.constant 6 : i32
    %246 = arith.addi %0, %c6_i32_76 : i32
    %247 = arith.index_cast %246 : i32 to index
    %248 = arith.index_cast %c4_i32_63 : i32 to index
    %249 = memref.load %arg1[%247, %248] : memref<8x8xi32, #tpu.memory_space<smem>>
    %250 = arith.index_cast %249 : i32 to index
    %c0_77 = arith.constant 0 : index
    %251 = vector.load %arg2[%250, %c0_77] : memref<256x128xf32, #tpu.memory_space<vmem>>, vector<1x128xf32>
    %c7_i32_78 = arith.constant 7 : i32
    %252 = arith.addi %0, %c7_i32_78 : i32
    %253 = arith.index_cast %252 : i32 to index
    %254 = arith.index_cast %c4_i32_63 : i32 to index
    %255 = memref.load %arg1[%253, %254] : memref<8x8xi32, #tpu.memory_space<smem>>
    %256 = arith.index_cast %255 : i32 to index
    %c0_79 = arith.constant 0 : index
    %257 = vector.load %arg2[%256, %c0_79] : memref<256x128xf32, #tpu.memory_space<vmem>>, vector<1x128xf32>
    %258 = tpu.concatenate %215, %221, %227, %233, %239, %245, %251, %257 in 0 : vector<1x128xf32>, vector<1x128xf32>, vector<1x128xf32>, vector<1x128xf32>, vector<1x128xf32>, vector<1x128xf32>, vector<1x128xf32>, vector<1x128xf32> -> vector<8x128xf32>
    %cst_80 = arith.constant 0.000000e+00 : f32
    %259 = vector.broadcast %cst_80 : f32 to vector<8x128xf32>
    %260 = arith.maximumf %258, %259 : vector<8x128xf32>
    %261 = arith.addf %209, %260 : vector<8x128xf32>
    %c5_i32_81 = arith.constant 5 : i32
    %c0_i32_82 = arith.constant 0 : i32
    %262 = arith.addi %0, %c0_i32_82 : i32
    %263 = arith.index_cast %262 : i32 to index
    %264 = arith.index_cast %c5_i32_81 : i32 to index
    %265 = memref.load %arg1[%263, %264] : memref<8x8xi32, #tpu.memory_space<smem>>
    %266 = arith.index_cast %265 : i32 to index
    %c0_83 = arith.constant 0 : index
    %267 = vector.load %arg2[%266, %c0_83] : memref<256x128xf32, #tpu.memory_space<vmem>>, vector<1x128xf32>
    %c1_i32_84 = arith.constant 1 : i32
    %268 = arith.addi %0, %c1_i32_84 : i32
    %269 = arith.index_cast %268 : i32 to index
    %270 = arith.index_cast %c5_i32_81 : i32 to index
    %271 = memref.load %arg1[%269, %270] : memref<8x8xi32, #tpu.memory_space<smem>>
    %272 = arith.index_cast %271 : i32 to index
    %c0_85 = arith.constant 0 : index
    %273 = vector.load %arg2[%272, %c0_85] : memref<256x128xf32, #tpu.memory_space<vmem>>, vector<1x128xf32>
    %c2_i32_86 = arith.constant 2 : i32
    %274 = arith.addi %0, %c2_i32_86 : i32
    %275 = arith.index_cast %274 : i32 to index
    %276 = arith.index_cast %c5_i32_81 : i32 to index
    %277 = memref.load %arg1[%275, %276] : memref<8x8xi32, #tpu.memory_space<smem>>
    %278 = arith.index_cast %277 : i32 to index
    %c0_87 = arith.constant 0 : index
    %279 = vector.load %arg2[%278, %c0_87] : memref<256x128xf32, #tpu.memory_space<vmem>>, vector<1x128xf32>
    %c3_i32_88 = arith.constant 3 : i32
    %280 = arith.addi %0, %c3_i32_88 : i32
    %281 = arith.index_cast %280 : i32 to index
    %282 = arith.index_cast %c5_i32_81 : i32 to index
    %283 = memref.load %arg1[%281, %282] : memref<8x8xi32, #tpu.memory_space<smem>>
    %284 = arith.index_cast %283 : i32 to index
    %c0_89 = arith.constant 0 : index
    %285 = vector.load %arg2[%284, %c0_89] : memref<256x128xf32, #tpu.memory_space<vmem>>, vector<1x128xf32>
    %c4_i32_90 = arith.constant 4 : i32
    %286 = arith.addi %0, %c4_i32_90 : i32
    %287 = arith.index_cast %286 : i32 to index
    %288 = arith.index_cast %c5_i32_81 : i32 to index
    %289 = memref.load %arg1[%287, %288] : memref<8x8xi32, #tpu.memory_space<smem>>
    %290 = arith.index_cast %289 : i32 to index
    %c0_91 = arith.constant 0 : index
    %291 = vector.load %arg2[%290, %c0_91] : memref<256x128xf32, #tpu.memory_space<vmem>>, vector<1x128xf32>
    %c5_i32_92 = arith.constant 5 : i32
    %292 = arith.addi %0, %c5_i32_92 : i32
    %293 = arith.index_cast %292 : i32 to index
    %294 = arith.index_cast %c5_i32_81 : i32 to index
    %295 = memref.load %arg1[%293, %294] : memref<8x8xi32, #tpu.memory_space<smem>>
    %296 = arith.index_cast %295 : i32 to index
    %c0_93 = arith.constant 0 : index
    %297 = vector.load %arg2[%296, %c0_93] : memref<256x128xf32, #tpu.memory_space<vmem>>, vector<1x128xf32>
    %c6_i32_94 = arith.constant 6 : i32
    %298 = arith.addi %0, %c6_i32_94 : i32
    %299 = arith.index_cast %298 : i32 to index
    %300 = arith.index_cast %c5_i32_81 : i32 to index
    %301 = memref.load %arg1[%299, %300] : memref<8x8xi32, #tpu.memory_space<smem>>
    %302 = arith.index_cast %301 : i32 to index
    %c0_95 = arith.constant 0 : index
    %303 = vector.load %arg2[%302, %c0_95] : memref<256x128xf32, #tpu.memory_space<vmem>>, vector<1x128xf32>
    %c7_i32_96 = arith.constant 7 : i32
    %304 = arith.addi %0, %c7_i32_96 : i32
    %305 = arith.index_cast %304 : i32 to index
    %306 = arith.index_cast %c5_i32_81 : i32 to index
    %307 = memref.load %arg1[%305, %306] : memref<8x8xi32, #tpu.memory_space<smem>>
    %308 = arith.index_cast %307 : i32 to index
    %c0_97 = arith.constant 0 : index
    %309 = vector.load %arg2[%308, %c0_97] : memref<256x128xf32, #tpu.memory_space<vmem>>, vector<1x128xf32>
    %310 = tpu.concatenate %267, %273, %279, %285, %291, %297, %303, %309 in 0 : vector<1x128xf32>, vector<1x128xf32>, vector<1x128xf32>, vector<1x128xf32>, vector<1x128xf32>, vector<1x128xf32>, vector<1x128xf32>, vector<1x128xf32> -> vector<8x128xf32>
    %cst_98 = arith.constant 0.000000e+00 : f32
    %311 = vector.broadcast %cst_98 : f32 to vector<8x128xf32>
    %312 = arith.maximumf %310, %311 : vector<8x128xf32>
    %313 = arith.addf %261, %312 : vector<8x128xf32>
    %c6_i32_99 = arith.constant 6 : i32
    %c0_i32_100 = arith.constant 0 : i32
    %314 = arith.addi %0, %c0_i32_100 : i32
    %315 = arith.index_cast %314 : i32 to index
    %316 = arith.index_cast %c6_i32_99 : i32 to index
    %317 = memref.load %arg1[%315, %316] : memref<8x8xi32, #tpu.memory_space<smem>>
    %318 = arith.index_cast %317 : i32 to index
    %c0_101 = arith.constant 0 : index
    %319 = vector.load %arg2[%318, %c0_101] : memref<256x128xf32, #tpu.memory_space<vmem>>, vector<1x128xf32>
    %c1_i32_102 = arith.constant 1 : i32
    %320 = arith.addi %0, %c1_i32_102 : i32
    %321 = arith.index_cast %320 : i32 to index
    %322 = arith.index_cast %c6_i32_99 : i32 to index
    %323 = memref.load %arg1[%321, %322] : memref<8x8xi32, #tpu.memory_space<smem>>
    %324 = arith.index_cast %323 : i32 to index
    %c0_103 = arith.constant 0 : index
    %325 = vector.load %arg2[%324, %c0_103] : memref<256x128xf32, #tpu.memory_space<vmem>>, vector<1x128xf32>
    %c2_i32_104 = arith.constant 2 : i32
    %326 = arith.addi %0, %c2_i32_104 : i32
    %327 = arith.index_cast %326 : i32 to index
    %328 = arith.index_cast %c6_i32_99 : i32 to index
    %329 = memref.load %arg1[%327, %328] : memref<8x8xi32, #tpu.memory_space<smem>>
    %330 = arith.index_cast %329 : i32 to index
    %c0_105 = arith.constant 0 : index
    %331 = vector.load %arg2[%330, %c0_105] : memref<256x128xf32, #tpu.memory_space<vmem>>, vector<1x128xf32>
    %c3_i32_106 = arith.constant 3 : i32
    %332 = arith.addi %0, %c3_i32_106 : i32
    %333 = arith.index_cast %332 : i32 to index
    %334 = arith.index_cast %c6_i32_99 : i32 to index
    %335 = memref.load %arg1[%333, %334] : memref<8x8xi32, #tpu.memory_space<smem>>
    %336 = arith.index_cast %335 : i32 to index
    %c0_107 = arith.constant 0 : index
    %337 = vector.load %arg2[%336, %c0_107] : memref<256x128xf32, #tpu.memory_space<vmem>>, vector<1x128xf32>
    %c4_i32_108 = arith.constant 4 : i32
    %338 = arith.addi %0, %c4_i32_108 : i32
    %339 = arith.index_cast %338 : i32 to index
    %340 = arith.index_cast %c6_i32_99 : i32 to index
    %341 = memref.load %arg1[%339, %340] : memref<8x8xi32, #tpu.memory_space<smem>>
    %342 = arith.index_cast %341 : i32 to index
    %c0_109 = arith.constant 0 : index
    %343 = vector.load %arg2[%342, %c0_109] : memref<256x128xf32, #tpu.memory_space<vmem>>, vector<1x128xf32>
    %c5_i32_110 = arith.constant 5 : i32
    %344 = arith.addi %0, %c5_i32_110 : i32
    %345 = arith.index_cast %344 : i32 to index
    %346 = arith.index_cast %c6_i32_99 : i32 to index
    %347 = memref.load %arg1[%345, %346] : memref<8x8xi32, #tpu.memory_space<smem>>
    %348 = arith.index_cast %347 : i32 to index
    %c0_111 = arith.constant 0 : index
    %349 = vector.load %arg2[%348, %c0_111] : memref<256x128xf32, #tpu.memory_space<vmem>>, vector<1x128xf32>
    %c6_i32_112 = arith.constant 6 : i32
    %350 = arith.addi %0, %c6_i32_112 : i32
    %351 = arith.index_cast %350 : i32 to index
    %352 = arith.index_cast %c6_i32_99 : i32 to index
    %353 = memref.load %arg1[%351, %352] : memref<8x8xi32, #tpu.memory_space<smem>>
    %354 = arith.index_cast %353 : i32 to index
    %c0_113 = arith.constant 0 : index
    %355 = vector.load %arg2[%354, %c0_113] : memref<256x128xf32, #tpu.memory_space<vmem>>, vector<1x128xf32>
    %c7_i32_114 = arith.constant 7 : i32
    %356 = arith.addi %0, %c7_i32_114 : i32
    %357 = arith.index_cast %356 : i32 to index
    %358 = arith.index_cast %c6_i32_99 : i32 to index
    %359 = memref.load %arg1[%357, %358] : memref<8x8xi32, #tpu.memory_space<smem>>
    %360 = arith.index_cast %359 : i32 to index
    %c0_115 = arith.constant 0 : index
    %361 = vector.load %arg2[%360, %c0_115] : memref<256x128xf32, #tpu.memory_space<vmem>>, vector<1x128xf32>
    %362 = tpu.concatenate %319, %325, %331, %337, %343, %349, %355, %361 in 0 : vector<1x128xf32>, vector<1x128xf32>, vector<1x128xf32>, vector<1x128xf32>, vector<1x128xf32>, vector<1x128xf32>, vector<1x128xf32>, vector<1x128xf32> -> vector<8x128xf32>
    %cst_116 = arith.constant 0.000000e+00 : f32
    %363 = vector.broadcast %cst_116 : f32 to vector<8x128xf32>
    %364 = arith.maximumf %362, %363 : vector<8x128xf32>
    %365 = arith.addf %313, %364 : vector<8x128xf32>
    %c7_i32_117 = arith.constant 7 : i32
    %c0_i32_118 = arith.constant 0 : i32
    %366 = arith.addi %0, %c0_i32_118 : i32
    %367 = arith.index_cast %366 : i32 to index
    %368 = arith.index_cast %c7_i32_117 : i32 to index
    %369 = memref.load %arg1[%367, %368] : memref<8x8xi32, #tpu.memory_space<smem>>
    %370 = arith.index_cast %369 : i32 to index
    %c0_119 = arith.constant 0 : index
    %371 = vector.load %arg2[%370, %c0_119] : memref<256x128xf32, #tpu.memory_space<vmem>>, vector<1x128xf32>
    %c1_i32_120 = arith.constant 1 : i32
    %372 = arith.addi %0, %c1_i32_120 : i32
    %373 = arith.index_cast %372 : i32 to index
    %374 = arith.index_cast %c7_i32_117 : i32 to index
    %375 = memref.load %arg1[%373, %374] : memref<8x8xi32, #tpu.memory_space<smem>>
    %376 = arith.index_cast %375 : i32 to index
    %c0_121 = arith.constant 0 : index
    %377 = vector.load %arg2[%376, %c0_121] : memref<256x128xf32, #tpu.memory_space<vmem>>, vector<1x128xf32>
    %c2_i32_122 = arith.constant 2 : i32
    %378 = arith.addi %0, %c2_i32_122 : i32
    %379 = arith.index_cast %378 : i32 to index
    %380 = arith.index_cast %c7_i32_117 : i32 to index
    %381 = memref.load %arg1[%379, %380] : memref<8x8xi32, #tpu.memory_space<smem>>
    %382 = arith.index_cast %381 : i32 to index
    %c0_123 = arith.constant 0 : index
    %383 = vector.load %arg2[%382, %c0_123] : memref<256x128xf32, #tpu.memory_space<vmem>>, vector<1x128xf32>
    %c3_i32_124 = arith.constant 3 : i32
    %384 = arith.addi %0, %c3_i32_124 : i32
    %385 = arith.index_cast %384 : i32 to index
    %386 = arith.index_cast %c7_i32_117 : i32 to index
    %387 = memref.load %arg1[%385, %386] : memref<8x8xi32, #tpu.memory_space<smem>>
    %388 = arith.index_cast %387 : i32 to index
    %c0_125 = arith.constant 0 : index
    %389 = vector.load %arg2[%388, %c0_125] : memref<256x128xf32, #tpu.memory_space<vmem>>, vector<1x128xf32>
    %c4_i32_126 = arith.constant 4 : i32
    %390 = arith.addi %0, %c4_i32_126 : i32
    %391 = arith.index_cast %390 : i32 to index
    %392 = arith.index_cast %c7_i32_117 : i32 to index
    %393 = memref.load %arg1[%391, %392] : memref<8x8xi32, #tpu.memory_space<smem>>
    %394 = arith.index_cast %393 : i32 to index
    %c0_127 = arith.constant 0 : index
    %395 = vector.load %arg2[%394, %c0_127] : memref<256x128xf32, #tpu.memory_space<vmem>>, vector<1x128xf32>
    %c5_i32_128 = arith.constant 5 : i32
    %396 = arith.addi %0, %c5_i32_128 : i32
    %397 = arith.index_cast %396 : i32 to index
    %398 = arith.index_cast %c7_i32_117 : i32 to index
    %399 = memref.load %arg1[%397, %398] : memref<8x8xi32, #tpu.memory_space<smem>>
    %400 = arith.index_cast %399 : i32 to index
    %c0_129 = arith.constant 0 : index
    %401 = vector.load %arg2[%400, %c0_129] : memref<256x128xf32, #tpu.memory_space<vmem>>, vector<1x128xf32>
    %c6_i32_130 = arith.constant 6 : i32
    %402 = arith.addi %0, %c6_i32_130 : i32
    %403 = arith.index_cast %402 : i32 to index
    %404 = arith.index_cast %c7_i32_117 : i32 to index
    %405 = memref.load %arg1[%403, %404] : memref<8x8xi32, #tpu.memory_space<smem>>
    %406 = arith.index_cast %405 : i32 to index
    %c0_131 = arith.constant 0 : index
    %407 = vector.load %arg2[%406, %c0_131] : memref<256x128xf32, #tpu.memory_space<vmem>>, vector<1x128xf32>
    %c7_i32_132 = arith.constant 7 : i32
    %408 = arith.addi %0, %c7_i32_132 : i32
    %409 = arith.index_cast %408 : i32 to index
    %410 = arith.index_cast %c7_i32_117 : i32 to index
    %411 = memref.load %arg1[%409, %410] : memref<8x8xi32, #tpu.memory_space<smem>>
    %412 = arith.index_cast %411 : i32 to index
    %c0_133 = arith.constant 0 : index
    %413 = vector.load %arg2[%412, %c0_133] : memref<256x128xf32, #tpu.memory_space<vmem>>, vector<1x128xf32>
    %414 = tpu.concatenate %371, %377, %383, %389, %395, %401, %407, %413 in 0 : vector<1x128xf32>, vector<1x128xf32>, vector<1x128xf32>, vector<1x128xf32>, vector<1x128xf32>, vector<1x128xf32>, vector<1x128xf32>, vector<1x128xf32> -> vector<8x128xf32>
    %cst_134 = arith.constant 0.000000e+00 : f32
    %415 = vector.broadcast %cst_134 : f32 to vector<8x128xf32>
    %416 = arith.maximumf %414, %415 : vector<8x128xf32>
    %417 = arith.addf %365, %416 : vector<8x128xf32>
    %c8_i32_135 = arith.constant 8 : i32
    %c0_136 = arith.constant 0 : index
    %c0_137 = arith.constant 0 : index
    %418 = vector.load %arg3[%c0_136, %c0_137] : memref<8x128xf32, #tpu.memory_space<vmem>>, vector<8x128xf32>
    tpu.vector_store %arg3[%c0_136, %c0_137], %417 {strides = array<i32>} : memref<8x128xf32, #tpu.memory_space<vmem>>, vector<8x128xf32>,
    return
  }
  func.func @transform_0(%arg0: i32, %arg1: memref<8x8xi32, #tpu.memory_space<smem>>) -> (i32, i32) {
    %c0_i32 = arith.constant 0 : i32
    %c0_i32_0 = arith.constant 0 : i32
    %c0_i32_1 = arith.constant 0 : i32
    return %c0_i32, %c0_i32_0 : i32, i32
  }
  func.func @transform_1(%arg0: i32, %arg1: memref<8x8xi32, #tpu.memory_space<smem>>) -> (i32, i32) {
    %c0_i32 = arith.constant 0 : i32
    %c0_i32_0 = arith.constant 0 : i32
    return %arg0, %c0_i32 : i32, i32
  }
}

</mosaic_0001>

<llo_original>
// kernel: tpu_custom_call.1
$region0: #{tpu_custom_call.1}
  #allocation0 [shape = 'u32[]', space=smem, size = 0x4, offset = 0x4, fixed_abs, tag = 'smem constant byte address 0x4 - core index']
  #allocation1 [shape = 'u32[72,128]{1,0:T(1,128)}', space=vmem, size = 0x9000, scoped, tag = 'internal scratch']
  #allocation2 [shape = 's32[1]{0}', space=sflag, size = 0x4, scoped, tag = 'scoped memory for tpu_custom_call.1']
  #allocation3 [shape = 'u8[4096]{0}', space=smem, size = 0x1000, scoped, tag = 'prefetched SMEM operand 0']
  %s0 = inlined_call_operand.hbm [shape: s32[8,8], index: 0, kind: input, shape index: {}]
  %s1 = inlined_call_operand.hbm [shape: f32[256,128], index: 1, kind: input, shape index: {}]
  %s2 = inlined_call_operand.hbm [shape: f32[8,128], index: 2, kind: output, shape index: {}]
  %s3 = sld [smem:[#allocation0]]
  $region18: #{tpu_custom_call.1} parent=0
    _
  %s5 = ssub.s32 1, %s3
  %s6 = scalar_select 0, %s5, %s3
  %s8 = sshll.u32 %s0, 4
  %s9 = int_to_ptr.hbm [resolvable:$true] %s8
  %11 = dma.hbm_to_smem %s9, 128, [#allocation3], [#allocation2]
  %13 = dma.done [#allocation2], 128
  %14 = sfence
  $region1: #{tpu_custom_call.1} parent=0
    #allocation4 [shape = 'u8[131072]{0}', space=vmem, size = 0x20000, scoped, tag = 'input window, operand 1, single buffered']
    #allocation5 [shape = 's32[1]{0}', space=sflag, size = 0x4, scoped, tag = 'scoped memory for tpu_custom_call.1']
    #allocation6 [shape = 's32[1]{0}', space=sflag, size = 0x4, scoped, tag = 'scoped memory for tpu_custom_call.1']
    #allocation7 [shape = 'u8[4096]{0}', space=vmem, size = 0x1000, scoped, tag = 'output window, operand 0, single buffered']
    %15 = vsyncpa [#allocation5], 0
    %16 = vsyncpa [#allocation6], 0
    // Predicated region
    $region2: #{tpu_custom_call.1} parent=1 // pred_check
      _
    $region3: #{tpu_custom_call.1} parent=1 // pred_check_branch
      %18 = sbr.rel (0) target = $region5
    $region4: #{tpu_custom_call.1} parent=1 // pred_region
      %20 = vsyncadd [#allocation5], 0
      %s21 = sshll.u32 %s1, 4
      %s22 = int_to_ptr.hbm [resolvable:$true] %s21
      %s23 = sshll.u32 [#allocation4], 4
      %s24 = int_to_ptr.vmem [resolvable:$true] %s23
      %29 = dma.hbm_to_vmem [thread:$0]  %s22, 4096, %s24, [#allocation5], 128, 128, 8
    $region5: #{tpu_custom_call.1} parent=1 // pred_fallthru
      _
    // Predicated region
    $region6: #{tpu_custom_call.1} parent=1 // pred_check
      _
    $region7: #{tpu_custom_call.1} parent=1 // pred_check_branch
      %31 = sbr.rel (0) target = $region9
    $region8: #{tpu_custom_call.1} parent=1 // pred_region
      %33 = dma.done [#allocation5], 4096
    $region9: #{tpu_custom_call.1} parent=1 // pred_fallthru
      _
    %s34 = smul.u32 0, 8
    %s35 = smul.u32 %s34, 128
    %s36 = sld [smem:[#allocation3 + %s35]]
    %s37 = scalar_lea.vmem [#allocation4], %s36
    %v38 = vld [vmem:[%s37] sm:$0x1]
    %s39 = sadd.s32 %s34, 1
    %s40 = smul.u32 %s39, 128
    %s41 = sld [smem:[#allocation3 + %s40]]
    %s42 = scalar_lea.vmem [#allocation4], %s41
    %v43 = vld [vmem:[%s42] sm:$0x1]
    %s44 = sadd.s32 %s34, 2
    %s45 = smul.u32 %s44, 128
    %s46 = sld [smem:[#allocation3 + %s45]]
    %s47 = scalar_lea.vmem [#allocation4], %s46
    %v48 = vld [vmem:[%s47] sm:$0x1]
    %s49 = sadd.s32 %s34, 3
    %s50 = smul.u32 %s49, 128
    %s51 = sld [smem:[#allocation3 + %s50]]
    %s52 = scalar_lea.vmem [#allocation4], %s51
    %v53 = vld [vmem:[%s52] sm:$0x1]
    %s54 = sadd.s32 %s34, 4
    %s55 = smul.u32 %s54, 128
    %s56 = sld [smem:[#allocation3 + %s55]]
    %s57 = scalar_lea.vmem [#allocation4], %s56
    %v58 = vld [vmem:[%s57] sm:$0x1]
    %s59 = sadd.s32 %s34, 5
    %s60 = smul.u32 %s59, 128
    %s61 = sld [smem:[#allocation3 + %s60]]
    %s62 = scalar_lea.vmem [#allocation4], %s61
    %v63 = vld [vmem:[%s62] sm:$0x1]
    %s64 = sadd.s32 %s34, 6
    %s65 = smul.u32 %s64, 128
    %s66 = sld [smem:[#allocation3 + %s65]]
    %s67 = scalar_lea.vmem [#allocation4], %s66
    %v68 = vld [vmem:[%s67] sm:$0x1]
    %s69 = sadd.s32 %s34, 7
    %s70 = smul.u32 %s69, 128
    %s71 = sld [smem:[#allocation3 + %s70]]
    %s72 = scalar_lea.vmem [#allocation4], %s71
    %v73 = vld [vmem:[%s72] sm:$0x1]
    %v75 = vrot.slane %v43, 7
    %v78 = vrot.slane %v48, 6
    %v81 = vrot.slane %v53, 5
    %v84 = vrot.slane %v58, 4
    %v87 = vrot.slane %v63, 3
    %v90 = vrot.slane %v68, 2
    %v93 = vrot.slane %v73, 1
    %vm95 = vcmask 1040384
    %v96 = vsel %vm95, %v38, %v75
    %vm97 = vcmask 1041408
    %v98 = vsel %vm97, %v96, %v78
    %vm99 = vcmask 1042432
    %v100 = vsel %vm99, %v98, %v81
    %vm101 = vcmask 1043456
    %v102 = vsel %vm101, %v100, %v84
    %vm103 = vcmask 1044480
    %v104 = vsel %vm103, %v102, %v87
    %vm105 = vcmask 1045504
    %v106 = vsel %vm105, %v104, %v90
    %vm107 = vcmask 1046528
    %v108 = vsel %vm107, %v106, %v93
    %v109 = vmax.f32 %v108, 0.0
    %v110 = vadd.f32 %v109, 0.0
    %s111 = sadd.s32 %s35, 1
    %s112 = sld [smem:[#allocation3 + %s111]]
    %s113 = scalar_lea.vmem [#allocation4], %s112
    %v114 = vld [vmem:[%s113] sm:$0x1]
    %s115 = sadd.s32 %s40, 1
    %s116 = sld [smem:[#allocation3 + %s115]]
    %s117 = scalar_lea.vmem [#allocation4], %s116
    %v118 = vld [vmem:[%s117] sm:$0x1]
    %s119 = sadd.s32 %s45, 1
    %s120 = sld [smem:[#allocation3 + %s119]]
    %s121 = scalar_lea.vmem [#allocation4], %s120
    %v122 = vld [vmem:[%s121] sm:$0x1]
    %s123 = sadd.s32 %s50, 1
    %s124 = sld [smem:[#allocation3 + %s123]]
    %s125 = scalar_lea.vmem [#allocation4], %s124
    %v126 = vld [vmem:[%s125] sm:$0x1]
    %s127 = sadd.s32 %s55, 1
    %s128 = sld [smem:[#allocation3 + %s127]]
    %s129 = scalar_lea.vmem [#allocation4], %s128
    %v130 = vld [vmem:[%s129] sm:$0x1]
    %s131 = sadd.s32 %s60, 1
    %s132 = sld [smem:[#allocation3 + %s131]]
    %s133 = scalar_lea.vmem [#allocation4], %s132
    %v134 = vld [vmem:[%s133] sm:$0x1]
    %s135 = sadd.s32 %s65, 1
    %s136 = sld [smem:[#allocation3 + %s135]]
    %s137 = scalar_lea.vmem [#allocation4], %s136
    %v138 = vld [vmem:[%s137] sm:$0x1]
    %s139 = sadd.s32 %s70, 1
    %s140 = sld [smem:[#allocation3 + %s139]]
    %s141 = scalar_lea.vmem [#allocation4], %s140
    %v142 = vld [vmem:[%s141] sm:$0x1]
    %v144 = vrot.slane %v118, 7
    %v147 = vrot.slane %v122, 6
    %v150 = vrot.slane %v126, 5
    %v153 = vrot.slane %v130, 4
    %v156 = vrot.slane %v134, 3
    %v159 = vrot.slane %v138, 2
    %v162 = vrot.slane %v142, 1
    %v164 = vsel %vm95, %v114, %v144
    %v165 = vsel %vm97, %v164, %v147
    %v166 = vsel %vm99, %v165, %v150
    %v167 = vsel %vm101, %v166, %v153
    %v168 = vsel %vm103, %v167, %v156
    %v169 = vsel %vm105, %v168, %v159
    %v170 = vsel %vm107, %v169, %v162
    %v171 = vmax.f32 %v170, 0.0
    %v172 = vadd.f32 %v110, %v171
    %s173 = sadd.s32 %s35, 2
    %s174 = sld [smem:[#allocation3 + %s173]]
    %s175 = scalar_lea.vmem [#allocation4], %s174
    %v176 = vld [vmem:[%s175] sm:$0x1]
    %s177 = sadd.s32 %s40, 2
    %s178 = sld [smem:[#allocation3 + %s177]]
    %s179 = scalar_lea.vmem [#allocation4], %s178
    %v180 = vld [vmem:[%s179] sm:$0x1]
    %s181 = sadd.s32 %s45, 2
    %s182 = sld [smem:[#allocation3 + %s181]]
    %s183 = scalar_lea.vmem [#allocation4], %s182
    %v184 = vld [vmem:[%s183] sm:$0x1]
    %s185 = sadd.s32 %s50, 2
    %s186 = sld [smem:[#allocation3 + %s185]]
    %s187 = scalar_lea.vmem [#allocation4], %s186
    %v188 = vld [vmem:[%s187] sm:$0x1]
    %s189 = sadd.s32 %s55, 2
    %s190 = sld [smem:[#allocation3 + %s189]]
    %s191 = scalar_lea.vmem [#allocation4], %s190
    %v192 = vld [vmem:[%s191] sm:$0x1]
    %s193 = sadd.s32 %s60, 2
    %s194 = sld [smem:[#allocation3 + %s193]]
    %s195 = scalar_lea.vmem [#allocation4], %s194
    %v196 = vld [vmem:[%s195] sm:$0x1]
    %s197 = sadd.s32 %s65, 2
    %s198 = sld [smem:[#allocation3 + %s197]]
    %s199 = scalar_lea.vmem [#allocation4], %s198
    %v200 = vld [vmem:[%s199] sm:$0x1]
    %s201 = sadd.s32 %s70, 2
    %s202 = sld [smem:[#allocation3 + %s201]]
    %s203 = scalar_lea.vmem [#allocation4], %s202
    %v204 = vld [vmem:[%s203] sm:$0x1]
    %v206 = vrot.slane %v180, 7
    %v209 = vrot.slane %v184, 6
    %v212 = vrot.slane %v188, 5
    %v215 = vrot.slane %v192, 4
    %v218 = vrot.slane %v196, 3
    %v221 = vrot.slane %v200, 2
    %v224 = vrot.slane %v204, 1
    %v226 = vsel %vm95, %v176, %v206
    %v227 = vsel %vm97, %v226, %v209
    %v228 = vsel %vm99, %v227, %v212
    %v229 = vsel %vm101, %v228, %v215
    %v230 = vsel %vm103, %v229, %v218
    %v231 = vsel %vm105, %v230, %v221
    %v232 = vsel %vm107, %v231, %v224
    %v233 = vmax.f32 %v232, 0.0
    %v234 = vadd.f32 %v172, %v233
    %s235 = sadd.s32 %s35, 3
    %s236 = sld [smem:[#allocation3 + %s235]]
    %s237 = scalar_lea.vmem [#allocation4], %s236
    %v238 = vld [vmem:[%s237] sm:$0x1]
    %s239 = sadd.s32 %s40, 3
    %s240 = sld [smem:[#allocation3 + %s239]]
    %s241 = scalar_lea.vmem [#allocation4], %s240
    %v242 = vld [vmem:[%s241] sm:$0x1]
    %s243 = sadd.s32 %s45, 3
    %s244 = sld [smem:[#allocation3 + %s243]]
    %s245 = scalar_lea.vmem [#allocation4], %s244
    %v246 = vld [vmem:[%s245] sm:$0x1]
    %s247 = sadd.s32 %s50, 3
    %s248 = sld [smem:[#allocation3 + %s247]]
    %s249 = scalar_lea.vmem [#allocation4], %s248
    %v250 = vld [vmem:[%s249] sm:$0x1]
    %s251 = sadd.s32 %s55, 3
    %s252 = sld [smem:[#allocation3 + %s251]]
    %s253 = scalar_lea.vmem [#allocation4], %s252
    %v254 = vld [vmem:[%s253] sm:$0x1]
    %s255 = sadd.s32 %s60, 3
    %s256 = sld [smem:[#allocation3 + %s255]]
    %s257 = scalar_lea.vmem [#allocation4], %s256
    %v258 = vld [vmem:[%s257] sm:$0x1]
    %s259 = sadd.s32 %s65, 3
    %s260 = sld [smem:[#allocation3 + %s259]]
    %s261 = scalar_lea.vmem [#allocation4], %s260
    %v262 = vld [vmem:[%s261] sm:$0x1]
    %s263 = sadd.s32 %s70, 3
    %s264 = sld [smem:[#allocation3 + %s263]]
    %s265 = scalar_lea.vmem [#allocation4], %s264
    %v266 = vld [vmem:[%s265] sm:$0x1]
    %v268 = vrot.slane %v242, 7
    %v271 = vrot.slane %v246, 6
    %v274 = vrot.slane %v250, 5
    %v277 = vrot.slane %v254, 4
    %v280 = vrot.slane %v258, 3
    %v283 = vrot.slane %v262, 2
    %v286 = vrot.slane %v266, 1
    %v288 = vsel %vm95, %v238, %v268
    %v289 = vsel %vm97, %v288, %v271
    %v290 = vsel %vm99, %v289, %v274
    %v291 = vsel %vm101, %v290, %v277
    %v292 = vsel %vm103, %v291, %v280
    %v293 = vsel %vm105, %v292, %v283
    %v294 = vsel %vm107, %v293, %v286
    %v295 = vmax.f32 %v294, 0.0
    %v296 = vadd.f32 %v234, %v295
    %s297 = sadd.s32 %s35, 4
    %s298 = sld [smem:[#allocation3 + %s297]]
    %s299 = scalar_lea.vmem [#allocation4], %s298
    %v300 = vld [vmem:[%s299] sm:$0x1]
    %s301 = sadd.s32 %s40, 4
    %s302 = sld [smem:[#allocation3 + %s301]]
    %s303 = scalar_lea.vmem [#allocation4], %s302
    %v304 = vld [vmem:[%s303] sm:$0x1]
    %s305 = sadd.s32 %s45, 4
    %s306 = sld [smem:[#allocation3 + %s305]]
    %s307 = scalar_lea.vmem [#allocation4], %s306
    %v308 = vld [vmem:[%s307] sm:$0x1]
    %s309 = sadd.s32 %s50, 4
    %s310 = sld [smem:[#allocation3 + %s309]]
    %s311 = scalar_lea.vmem [#allocation4], %s310
    %v312 = vld [vmem:[%s311] sm:$0x1]
    %s313 = sadd.s32 %s55, 4
    %s314 = sld [smem:[#allocation3 + %s313]]
    %s315 = scalar_lea.vmem [#allocation4], %s314
    %v316 = vld [vmem:[%s315] sm:$0x1]
    %s317 = sadd.s32 %s60, 4
    %s318 = sld [smem:[#allocation3 + %s317]]
    %s319 = scalar_lea.vmem [#allocation4], %s318
    %v320 = vld [vmem:[%s319] sm:$0x1]
    %s321 = sadd.s32 %s65, 4
    %s322 = sld [smem:[#allocation3 + %s321]]
    %s323 = scalar_lea.vmem [#allocation4], %s322
    %v324 = vld [vmem:[%s323] sm:$0x1]
    %s325 = sadd.s32 %s70, 4
    %s326 = sld [smem:[#allocation3 + %s325]]
    %s327 = scalar_lea.vmem [#allocation4], %s326
    %v328 = vld [vmem:[%s327] sm:$0x1]
    %v330 = vrot.slane %v304, 7
    %v333 = vrot.slane %v308, 6
    %v336 = vrot.slane %v312, 5
    %v339 = vrot.slane %v316, 4
    %v342 = vrot.slane %v320, 3
    %v345 = vrot.slane %v324, 2
    %v348 = vrot.slane %v328, 1
    %v350 = vsel %vm95, %v300, %v330
    %v351 = vsel %vm97, %v350, %v333
    %v352 = vsel %vm99, %v351, %v336
    %v353 = vsel %vm101, %v352, %v339
    %v354 = vsel %vm103, %v353, %v342
    %v355 = vsel %vm105, %v354, %v345
    %v356 = vsel %vm107, %v355, %v348
    %v357 = vmax.f32 %v356, 0.0
    %v358 = vadd.f32 %v296, %v357
    %s359 = sadd.s32 %s35, 5
    %s360 = sld [smem:[#allocation3 + %s359]]
    %s361 = scalar_lea.vmem [#allocation4], %s360
    %v362 = vld [vmem:[%s361] sm:$0x1]
    %s363 = sadd.s32 %s40, 5
    %s364 = sld [smem:[#allocation3 + %s363]]
    %s365 = scalar_lea.vmem [#allocation4], %s364
    %v366 = vld [vmem:[%s365] sm:$0x1]
    %s367 = sadd.s32 %s45, 5
    %s368 = sld [smem:[#allocation3 + %s367]]
    %s369 = scalar_lea.vmem [#allocation4], %s368
    %v370 = vld [vmem:[%s369] sm:$0x1]
    %s371 = sadd.s32 %s50, 5
    %s372 = sld [smem:[#allocation3 + %s371]]
    %s373 = scalar_lea.vmem [#allocation4], %s372
    %v374 = vld [vmem:[%s373] sm:$0x1]
    %s375 = sadd.s32 %s55, 5
    %s376 = sld [smem:[#allocation3 + %s375]]
    %s377 = scalar_lea.vmem [#allocation4], %s376
    %v378 = vld [vmem:[%s377] sm:$0x1]
    %s379 = sadd.s32 %s60, 5
    %s380 = sld [smem:[#allocation3 + %s379]]
    %s381 = scalar_lea.vmem [#allocation4], %s380
    %v382 = vld [vmem:[%s381] sm:$0x1]
    %s383 = sadd.s32 %s65, 5
    %s384 = sld [smem:[#allocation3 + %s383]]
    %s385 = scalar_lea.vmem [#allocation4], %s384
    %v386 = vld [vmem:[%s385] sm:$0x1]
    %s387 = sadd.s32 %s70, 5
    %s388 = sld [smem:[#allocation3 + %s387]]
    %s389 = scalar_lea.vmem [#allocation4], %s388
    %v390 = vld [vmem:[%s389] sm:$0x1]
    %v392 = vrot.slane %v366, 7
    %v395 = vrot.slane %v370, 6
    %v398 = vrot.slane %v374, 5
    %v401 = vrot.slane %v378, 4
    %v404 = vrot.slane %v382, 3
    %v407 = vrot.slane %v386, 2
    %v410 = vrot.slane %v390, 1
    %v412 = vsel %vm95, %v362, %v392
    %v413 = vsel %vm97, %v412, %v395
    %v414 = vsel %vm99, %v413, %v398
    %v415 = vsel %vm101, %v414, %v401
    %v416 = vsel %vm103, %v415, %v404
    %v417 = vsel %vm105, %v416, %v407
    %v418 = vsel %vm107, %v417, %v410
    %v419 = vmax.f32 %v418, 0.0
    %v420 = vadd.f32 %v358, %v419
    %s421 = sadd.s32 %s35, 6
    %s422 = sld [smem:[#allocation3 + %s421]]
    %s423 = scalar_lea.vmem [#allocation4], %s422
    %v424 = vld [vmem:[%s423] sm:$0x1]
    %s425 = sadd.s32 %s40, 6
    %s426 = sld [smem:[#allocation3 + %s425]]
    %s427 = scalar_lea.vmem [#allocation4], %s426
    %v428 = vld [vmem:[%s427] sm:$0x1]
    %s429 = sadd.s32 %s45, 6
    %s430 = sld [smem:[#allocation3 + %s429]]
    %s431 = scalar_lea.vmem [#allocation4], %s430
    %v432 = vld [vmem:[%s431] sm:$0x1]
    %s433 = sadd.s32 %s50, 6
    %s434 = sld [smem:[#allocation3 + %s433]]
    %s435 = scalar_lea.vmem [#allocation4], %s434
    %v436 = vld [vmem:[%s435] sm:$0x1]
    %s437 = sadd.s32 %s55, 6
    %s438 = sld [smem:[#allocation3 + %s437]]
    %s439 = scalar_lea.vmem [#allocation4], %s438
    %v440 = vld [vmem:[%s439] sm:$0x1]
    %s441 = sadd.s32 %s60, 6
    %s442 = sld [smem:[#allocation3 + %s441]]
    %s443 = scalar_lea.vmem [#allocation4], %s442
    %v444 = vld [vmem:[%s443] sm:$0x1]
    %s445 = sadd.s32 %s65, 6
    %s446 = sld [smem:[#allocation3 + %s445]]
    %s447 = scalar_lea.vmem [#allocation4], %s446
    %v448 = vld [vmem:[%s447] sm:$0x1]
    %s449 = sadd.s32 %s70, 6
    %s450 = sld [smem:[#allocation3 + %s449]]
    %s451 = scalar_lea.vmem [#allocation4], %s450
    %v452 = vld [vmem:[%s451] sm:$0x1]
    %v454 = vrot.slane %v428, 7
    %v457 = vrot.slane %v432, 6
    %v460 = vrot.slane %v436, 5
    %v463 = vrot.slane %v440, 4
    %v466 = vrot.slane %v444, 3
    %v469 = vrot.slane %v448, 2
    %v472 = vrot.slane %v452, 1
    %v474 = vsel %vm95, %v424, %v454
    %v475 = vsel %vm97, %v474, %v457
    %v476 = vsel %vm99, %v475, %v460
    %v477 = vsel %vm101, %v476, %v463
    %v478 = vsel %vm103, %v477, %v466
    %v479 = vsel %vm105, %v478, %v469
    %v480 = vsel %vm107, %v479, %v472
    %v481 = vmax.f32 %v480, 0.0
    %v482 = vadd.f32 %v420, %v481
    %s483 = sadd.s32 %s35, 7
    %s484 = sld [smem:[#allocation3 + %s483]]
    %s485 = scalar_lea.vmem [#allocation4], %s484
    %v486 = vld [vmem:[%s485] sm:$0x1]
    %s487 = sadd.s32 %s40, 7
    %s488 = sld [smem:[#allocation3 + %s487]]
    %s489 = scalar_lea.vmem [#allocation4], %s488
    %v490 = vld [vmem:[%s489] sm:$0x1]
    %s491 = sadd.s32 %s45, 7
    %s492 = sld [smem:[#allocation3 + %s491]]
    %s493 = scalar_lea.vmem [#allocation4], %s492
    %v494 = vld [vmem:[%s493] sm:$0x1]
    %s495 = sadd.s32 %s50, 7
    %s496 = sld [smem:[#allocation3 + %s495]]
    %s497 = scalar_lea.vmem [#allocation4], %s496
    %v498 = vld [vmem:[%s497] sm:$0x1]
    %s499 = sadd.s32 %s55, 7
    %s500 = sld [smem:[#allocation3 + %s499]]
    %s501 = scalar_lea.vmem [#allocation4], %s500
    %v502 = vld [vmem:[%s501] sm:$0x1]
    %s503 = sadd.s32 %s60, 7
    %s504 = sld [smem:[#allocation3 + %s503]]
    %s505 = scalar_lea.vmem [#allocation4], %s504
    %v506 = vld [vmem:[%s505] sm:$0x1]
    %s507 = sadd.s32 %s65, 7
    %s508 = sld [smem:[#allocation3 + %s507]]
    %s509 = scalar_lea.vmem [#allocation4], %s508
    %v510 = vld [vmem:[%s509] sm:$0x1]
    %s511 = sadd.s32 %s70, 7
    %s512 = sld [smem:[#allocation3 + %s511]]
    %s513 = scalar_lea.vmem [#allocation4], %s512
    %v514 = vld [vmem:[%s513] sm:$0x1]
    %v516 = vrot.slane %v490, 7
    %v519 = vrot.slane %v494, 6
    %v522 = vrot.slane %v498, 5
    %v525 = vrot.slane %v502, 4
    %v528 = vrot.slane %v506, 3
    %v531 = vrot.slane %v510, 2
    %v534 = vrot.slane %v514, 1
    %v536 = vsel %vm95, %v486, %v516
    %v537 = vsel %vm97, %v536, %v519
    %v538 = vsel %vm99, %v537, %v522
    %v539 = vsel %vm101, %v538, %v525
    %v540 = vsel %vm103, %v539, %v528
    %v541 = vsel %vm105, %v540, %v531
    %v542 = vsel %vm107, %v541, %v534
    %v543 = vmax.f32 %v542, 0.0
    %v544 = vadd.f32 %v482, %v543
    %545 = vst [vmem:[#allocation7] sm:$0xff] %v544
    // Predicated region
    $region10: #{tpu_custom_call.1} parent=1 // pred_check
      _
    $region11: #{tpu_custom_call.1} parent=1 // pred_check_branch
      %547 = sbr.rel (0) target = $region13
    $region12: #{tpu_custom_call.1} parent=1 // pred_region
      %549 = vsyncadd [#allocation6], 0
      %s551 = sshll.u32 [#allocation7], 4
      %s552 = int_to_ptr.vmem [resolvable:$true] %s551
      %s553 = sshll.u32 %s2, 4
      %s554 = int_to_ptr.hbm [resolvable:$true] %s553
      %556 = dma.vmem_to_hbm [thread:$0]  %s552, 128, %s554, [#allocation6]
    $region13: #{tpu_custom_call.1} parent=1 // pred_fallthru
      _
    // Predicated region
    $region14: #{tpu_custom_call.1} parent=1 // pred_check
      _
    $region15: #{tpu_custom_call.1} parent=1 // pred_check_branch
      %558 = sbr.rel (0) target = $region17
    $region16: #{tpu_custom_call.1} parent=1 // pred_region
      %560 = dma.done [#allocation6], 128
    $region17: #{tpu_custom_call.1} parent=1 // pred_fallthru
      _
    %561 = vsyncpa [#allocation5], 1
    %562 = vsyncpa [#allocation6], 1

</llo_original>
